<compile_context>
chip_gen: v5e
topology: v5e:2x2
jax: 0.10.0
libtpu: 0.0.40
codegen_flags: <defaults>
</compile_context>

<pallas_src>
import functools
import math

import jax
import jax.numpy as jnp
from jax.experimental import pallas as pl
from jax.experimental.pallas import tpu as pltpu

_VMEM_LIMIT_BYTES = 32 * 1024 * 1024  # safe on v5e/v6e/v7x; tiles are ~2 MiB


# ----------------------------------------------------------------------------
# Pallas kernels
# ----------------------------------------------------------------------------
def _project_kernel(x_ref, wl_ref, wr_ref, b_ref, p_ref, r_ref):
    """Per-row-tile projections: P = X @ Wl (bf16), R = X @ Wr + b (f32)."""
    x = x_ref[...]
    p = jnp.dot(x, wl_ref[...], preferred_element_type=jnp.float32)
    p_ref[...] = p.astype(p_ref.dtype)
    r = jnp.dot(x, wr_ref[...], preferred_element_type=jnp.float32) + b_ref[...]
    r_ref[...] = r.astype(r_ref.dtype)


def _aggregate_kernel(a_ref, p_ref, r_ref, dinv_ref, *rest, emit_raw, emit_act):
    """acc += A_tile @ P_k ; finalize: raw = acc * (1/deg) + R ; act = relu.

    Ref layout of *rest:
      emit_raw & emit_act : (raw_ref, act_ref)           accumulator = raw_ref
      emit_raw only       : (raw_ref,)                   accumulator = raw_ref
      emit_act only       : (act_ref, acc_scratch)       accumulator = scratch
    The raw f32 output is resident across the k axis (index_map constant in k)
    so it can serve directly as the accumulator.
    """
    if emit_raw:
        raw_ref = rest[0]
        act_ref = rest[1] if emit_act else None
        acc_ref = raw_ref
    else:
        raw_ref = None
        act_ref = rest[0]
        acc_ref = rest[1]

    k = pl.program_id(1)

    @pl.when(k == 0)
    def _init():
        acc_ref[...] = jnp.zeros_like(acc_ref)

    acc_ref[...] += jnp.dot(a_ref[...], p_ref[...],
                            preferred_element_type=jnp.float32)

    @pl.when(k == pl.num_programs(1) - 1)
    def _finalize():
        raw = acc_ref[...] * dinv_ref[...] + r_ref[...]
        if emit_raw:
            raw_ref[...] = raw
        if emit_act:
            act_ref[...] = jnp.maximum(raw, 0.0).astype(act_ref.dtype)


def _scatter_mean_kernel(s_ref, x_ref, cntinv_ref, o_ref):
    """Cluster scatter-mean: o += S_ind @ X ; finalize: o * (1/count)."""
    k = pl.program_id(0)

    @pl.when(k == 0)
    def _init():
        o_ref[...] = jnp.zeros_like(o_ref)

    o_ref[...] += jnp.dot(s_ref[...], x_ref[...],
                          preferred_element_type=jnp.float32)

    @pl.when(k == pl.num_programs(0) - 1)
    def _finalize():
        o_ref[...] = o_ref[...] * cntinv_ref[...]


# ----------------------------------------------------------------------------
# Wrappers calling pallas_call (padded, tiled)
# ----------------------------------------------------------------------------
def sage_conv_layer(a_pad, dinv_pad, x_pad, wl_pad, wr_pad, b_pad,
                    *, tm, tk, emit_raw=True, emit_act=True):
    """One SAGEConv layer on padded arrays. Returns (raw | None, act | None)."""
    np_ = a_pad.shape[0]
    fp_in = x_pad.shape[1]
    fp_out = wl_pad.shape[1]

    # 1) Projection kernel: P = X @ Wl (bf16), R = X @ Wr + b (f32).
    #    Weight BlockSpecs use a constant index_map, so the weights stay
    #    resident in VMEM across row tiles.
    p, r = pl.pallas_call(
        _project_kernel,
        out_shape=(jax.ShapeDtypeStruct((np_, fp_out), jnp.bfloat16),
                   jax.ShapeDtypeStruct((np_, fp_out), jnp.float32)),
        grid_spec=pltpu.PrefetchScalarGridSpec(
            num_scalar_prefetch=0,
            grid=(np_ // tm,),
            in_specs=[pl.BlockSpec((tm, fp_in), lambda i: (i, 0)),
                      pl.BlockSpec((fp_in, fp_out), lambda i: (0, 0)),
                      pl.BlockSpec((fp_in, fp_out), lambda i: (0, 0)),
                      pl.BlockSpec((1, fp_out), lambda i: (0, 0))],
            out_specs=(pl.BlockSpec((tm, fp_out), lambda i: (i, 0)),
                       pl.BlockSpec((tm, fp_out), lambda i: (i, 0)))),
        compiler_params=pltpu.CompilerParams(
            dimension_semantics=("parallel",),
            vmem_limit_bytes=_VMEM_LIMIT_BYTES),
    )(x_pad, wl_pad, wr_pad, b_pad)

    # 2) Tiled aggregation: raw = (A @ P) * (1/deg) + R ; act = relu(raw).
    out_shapes, out_specs = [], []
    if emit_raw:
        out_shapes.append(jax.ShapeDtypeStruct((np_, fp_out), jnp.float32))
        out_specs.append(pl.BlockSpec((tm, fp_out), lambda i, k: (i, 0)))
    if emit_act:
        out_shapes.append(jax.ShapeDtypeStruct((np_, fp_out), jnp.bfloat16))
        out_specs.append(pl.BlockSpec((tm, fp_out), lambda i, k: (i, 0)))
    # Scratch accumulator only needed when the f32 raw output is not emitted.
    scratch = [] if emit_raw else [pltpu.VMEM((tm, fp_out), jnp.float32)]

    outs = pl.pallas_call(
        functools.partial(_aggregate_kernel, emit_raw=emit_raw,
                          emit_act=emit_act),
        out_shape=tuple(out_shapes),
        grid_spec=pltpu.PrefetchScalarGridSpec(
            num_scalar_prefetch=0,
            grid=(np_ // tm, np_ // tk),
            in_specs=[pl.BlockSpec((tm, tk), lambda i, k: (i, k)),      # A
                      pl.BlockSpec((tk, fp_out), lambda i, k: (k, 0)),  # P
                      pl.BlockSpec((tm, fp_out), lambda i, k: (i, 0)),  # R
                      pl.BlockSpec((tm, 1), lambda i, k: (i, 0))],      # 1/deg
            out_specs=tuple(out_specs),
            scratch_shapes=scratch),
        compiler_params=pltpu.CompilerParams(
            dimension_semantics=("parallel", "arbitrary"),
            vmem_limit_bytes=_VMEM_LIMIT_BYTES),
    )(a_pad, p, r, dinv_pad)

    if not isinstance(outs, (tuple, list)):
        outs = (outs,)
    outs = list(outs)
    raw_out = outs.pop(0) if emit_raw else None
    act_out = outs.pop(0) if emit_act else None
    return raw_out, act_out


def scatter_mean_call(s_pad, x_pad, cnt_inv_pad, *, tk):
    """scatter(x, cluster, reduce='mean') as (S_ind @ X) * (1/count)."""
    cp, np_ = s_pad.shape
    fp = x_pad.shape[1]
    return pl.pallas_call(
        _scatter_mean_kernel,
        out_shape=jax.ShapeDtypeStruct((cp, fp), jnp.float32),
        grid_spec=pltpu.PrefetchScalarGridSpec(
            num_scalar_prefetch=0,
            grid=(np_ // tk,),
            in_specs=[pl.BlockSpec((cp, tk), lambda k: (0, k)),
                      pl.BlockSpec((tk, fp), lambda k: (k, 0)),
                      pl.BlockSpec((cp, 1), lambda k: (0, 0))],
            out_specs=pl.BlockSpec((cp, fp), lambda k: (0, 0))),
        compiler_params=pltpu.CompilerParams(
            dimension_semantics=("arbitrary",),
            vmem_limit_bytes=_VMEM_LIMIT_BYTES),
    )(s_pad, x_pad, cnt_inv_pad)


# ----------------------------------------------------------------------------
# Glue: padded dense operators, parameter init, tile choice, forward
# ----------------------------------------------------------------------------
def _round_up(x, m):
    return ((x + m - 1) // m) * m


def _pad2(x, r, c):
    return jnp.pad(x, ((0, r - x.shape[0]), (0, c - x.shape[1])))


def _choose_tiles(n, tm_max=512, tk_max=512):
    """Row tile tm (parallel axis) and reduction tile tk.

    tm is capped so there are >= 2 row tiles when the graph allows it (keeps
    both v7x TensorCores busy); both default to 512 (multiple of 256 for the
    v6e/v7x 2x256 MXU, and 4x128-native on v5e).
    """
    n128 = _round_up(n, 128)
    tm = max(128, min(tm_max, (n128 // 2) // 128 * 128))
    tk = max(128, min(tk_max, n128))
    return tm, tk


def _largest_divisor_tile(total, cap=2048):
    """Largest multiple-of-128 tile <= cap that divides `total`."""
    t = min(cap, total)
    t -= t % 128
    while t >= 128:
        if total % t == 0:
            return t
        t -= 128
    return 128


def build_mean_adjacency_padded(edge_index, num_nodes, np_):
    """A[i, j] = #edges j -> i (PyG message direction), built pre-padded.

    Edge counts are exact in bf16 for multiplicities <= 256 (simple graphs OK).
    """
    src, dst = edge_index[0], edge_index[1]
    a = jnp.zeros((np_, np_), jnp.float32).at[dst, src].add(1.0)
    dinv = 1.0 / jnp.maximum(a.sum(axis=1, keepdims=True), 1.0)
    return a.astype(jnp.bfloat16), dinv


def build_cluster_mean_padded(cluster, num_nodes, cp, np_):
    """S[c, n] = 1 if cluster[n] == c, built pre-padded; plus 1/|cluster|."""
    s = jnp.zeros((cp, np_), jnp.float32).at[
        cluster, jnp.arange(num_nodes)].add(1.0)
    cnt_inv = 1.0 / jnp.maximum(s.sum(axis=1, keepdims=True), 1.0)
    return s.astype(jnp.bfloat16), cnt_inv


def init_sage_params(key, in_channels, hidden_channels, out_channels, num_layers):
    dims = [in_channels] + [hidden_channels] * (num_layers - 1) + [out_channels]
    params = []
    for layer in range(num_layers):
        f_in, f_out = dims[layer], dims[layer + 1]
        key, k1, k2, k3 = jax.random.split(key, 4)
        bound = 1.0 / jnp.sqrt(jnp.float32(f_in))
        w_l = jax.random.uniform(k1, (f_in, f_out), jnp.float32, -bound, bound)
        w_r = jax.random.uniform(k2, (f_in, f_out), jnp.float32, -bound, bound)
        b_l = jax.random.uniform(k3, (1, f_out), jnp.float32, -bound, bound)
        params.append((w_l, w_r, b_l))
    return params


def sage_forward(params, x, edge_index, cluster, num_clusters,
                 *, tm_max=512, tk_max=512):
    """Mirrors SAGE.forward (eval mode): returns (x_final, out_last_hidden, g)."""
    n, f_in = x.shape
    num_layers = len(params)

    tm, tk = _choose_tiles(n, tm_max, tk_max)
    lcm = tm * tk // math.gcd(tm, tk)
    np_ = _round_up(n, lcm)                  # node rows padded to tile multiple
    cp = _round_up(num_clusters, 16)         # sublane-friendly cluster rows

    # Dense mean-aggregation operator, built directly into the padded buffer.
    a_pad, dinv_pad = build_mean_adjacency_padded(edge_index, n, np_)
    # Cluster scatter-mean operator, likewise pre-padded.
    s_pad, cnt_inv_pad = build_cluster_mean_padded(cluster, n, cp, np_)

    # Pad weights to lane-dense (multiple-of-128) feature dims, cast to bf16.
    padded_params = []
    for (wl, wr, b) in params:
        fi, fo = wl.shape
        fpi, fpo = _round_up(fi, 128), _round_up(fo, 128)
        padded_params.append((_pad2(wl, fpi, fpo).astype(jnp.bfloat16),
                              _pad2(wr, fpi, fpo).astype(jnp.bfloat16),
                              _pad2(b, 1, fpo)))

    x_pad = _pad2(x, np_, _round_up(f_in, 128)).astype(jnp.bfloat16)

    out_raw = None
    for li in range(num_layers - 1):
        wl_p, wr_p, b_p = padded_params[li]
        emit_raw = (li == num_layers - 2)    # only the last hidden raw is used
        raw_p, act_p = sage_conv_layer(a_pad, dinv_pad, x_pad, wl_p, wr_p, b_p,
                                       tm=tm, tk=tk,
                                       emit_raw=emit_raw, emit_act=True)
        if emit_raw:
            out_raw = raw_p
        # dropout: eval mode -> identity.  TODO(synk): training-mode dropout.
        x_pad = act_p                         # already bf16, emitted by kernel

    tk_scatter = _largest_divisor_tile(np_, cap=2048)
    g_pad = scatter_mean_call(s_pad, x_pad, cnt_inv_pad, tk=tk_scatter)

    wl_p, wr_p, b_p = padded_params[-1]
    xfin_p, _ = sage_conv_layer(a_pad, dinv_pad, x_pad, wl_p, wr_p, b_p,
                                tm=tm, tk=tk, emit_raw=True, emit_act=False)

    hid = params[-2][0].shape[1]
    out_c = params[-1][0].shape[1]
    x_final = xfin_p[:n, :out_c]
    out = out_raw[:n, :hid]
    g = g_pad[:num_clusters, :hid]
    return x_final, out, g


# ----------------------------------------------------------------------------
# Pure-JAX reference (same bf16 matmul operands) for sanity checking
# ----------------------------------------------------------------------------
def reference_forward(params, x, edge_index, cluster, num_clusters):
    n = x.shape[0]
    a_bf, dinv = build_mean_adjacency_padded(edge_index, n, n)
    xs = x
    out = None
    for (wl, wr, b) in params[:-1]:
        xb = xs.astype(jnp.bfloat16)
        p = jnp.dot(xb, wl.astype(jnp.bfloat16),
                    preferred_element_type=jnp.float32).astype(jnp.bfloat16)
        raw = (jnp.dot(a_bf, p, preferred_element_type=jnp.float32) * dinv
               + jnp.dot(xb, wr.astype(jnp.bfloat16),
                         preferred_element_type=jnp.float32) + b)
        out = raw
        xs = jnp.maximum(raw, 0.0)
    s_bf, cnt_inv = build_cluster_mean_padded(cluster, n, num_clusters, n)
    g = jnp.dot(s_bf, xs.astype(jnp.bfloat16),
                preferred_element_type=jnp.float32) * cnt_inv
    wl, wr, b = params[-1]
    xb = xs.astype(jnp.bfloat16)
    p = jnp.dot(xb, wl.astype(jnp.bfloat16),
                preferred_element_type=jnp.float32).astype(jnp.bfloat16)
    x_final = (jnp.dot(a_bf, p, preferred_element_type=jnp.float32) * dinv
               + jnp.dot(xb, wr.astype(jnp.bfloat16),
                         preferred_element_type=jnp.float32) + b)
    return x_final, out, g


# ----------------------------------------------------------------------------
if __name__ == "__main__":
    key = jax.random.PRNGKey(0)

    # Small shapes consistent with the module (big enough that the padded node
    # count (512) splits into 2 row tiles x 1 reduction tile of 256x512).
    N = 384                 # nodes
    E = 1536                # edges
    IN_C, HID_C, OUT_C = 32, 32, 16
    NUM_LAYERS = 3
    NUM_CLUSTERS = 4

    key, kx, ke, kc, kp = jax.random.split(key, 5)
    x = jax.random.normal(kx, (N, IN_C), jnp.float32)
    edge_index = jax.random.randint(ke, (2, E), 0, N, jnp.int32)
    cluster = jax.random.randint(kc, (N,), 0, NUM_CLUSTERS, jnp.int32)

    params = init_sage_params(kp, IN_C, HID_C, OUT_C, NUM_LAYERS)

    x_final, out_hidden, g = sage_forward(params, x, edge_index, cluster,
                                          NUM_CLUSTERS)
    jax.block_until_ready((x_final, out_hidden, g))

    assert x_final.shape == (N, OUT_C)
    assert out_hidden.shape == (N, HID_C)
    assert g.shape == (NUM_CLUSTERS, HID_C)

    # Sanity check against a pure-JAX reference using the same bf16 operands.
    xr, outr, gr = reference_forward(params, x, edge_index, cluster,
                                     NUM_CLUSTERS)
    assert bool(jnp.allclose(x_final, xr, atol=5e-2, rtol=5e-2))
    assert bool(jnp.allclose(out_hidden, outr, atol=5e-2, rtol=5e-2))
    assert bool(jnp.allclose(g, gr, atol=5e-2, rtol=5e-2))

    print("KERNEL_OK")
</pallas_src>

<mosaic_0001>
module attributes {stable_mosaic.version = 11 : i64} {
  func.func @_project_kernel(%arg0: i32, %arg1: memref<128x128xbf16, #tpu.memory_space<vmem>>, %arg2: memref<128x128xbf16, #tpu.memory_space<vmem>>, %arg3: memref<128x128xbf16, #tpu.memory_space<vmem>>, %arg4: memref<1x128xf32, #tpu.memory_space<vmem>>, %arg5: memref<128x128xbf16, #tpu.memory_space<vmem>>, %arg6: memref<128x128xf32, #tpu.memory_space<vmem>>) attributes {dimension_semantics = [#tpu.dimension_semantics<parallel>], iteration_bounds = array<i64: 3>, scalar_prefetch = 0 : i64, scratch_operands = 0 : i64, tpu.core_type = #tpu.core_type<tc>, window_params = [{transform_indices = @transform_0, window_bounds = array<i64: 128, 128>}, {pipeline_mode = #tpu.pipeline_mode<synchronous>, transform_indices = @transform_1, window_bounds = array<i64: 128, 128>}, {pipeline_mode = #tpu.pipeline_mode<synchronous>, transform_indices = @transform_2, window_bounds = array<i64: 128, 128>}, {pipeline_mode = #tpu.pipeline_mode<synchronous>, transform_indices = @transform_3, window_bounds = array<i64: 1, 128>}, {transform_indices = @transform_4, window_bounds = array<i64: 128, 128>}, {transform_indices = @transform_5, window_bounds = array<i64: 128, 128>}]} {
    %c0 = arith.constant 0 : index
    %c0_0 = arith.constant 0 : index
    %0 = vector.load %arg1[%c0, %c0_0] : memref<128x128xbf16, #tpu.memory_space<vmem>>, vector<128x128xbf16>
    %c0_1 = arith.constant 0 : index
    %c0_2 = arith.constant 0 : index
    %1 = vector.load %arg2[%c0_1, %c0_2] : memref<128x128xbf16, #tpu.memory_space<vmem>>, vector<128x128xbf16>
    %cst = arith.constant dense<0.000000e+00> : vector<128x128xf32>
    %2 = tpu.matmul %0, %1, %cst {dimension_numbers = #tpu.dot_dimension_numbers<[1], [0], [0], [1], [0, 0, 1, 1], [], []>} : vector<128x128xbf16>, vector<128x128xbf16>, vector<128x128xf32> -> vector<128x128xf32>
    %3 = arith.truncf %2 : vector<128x128xf32> to vector<128x128xbf16>
    %c0_3 = arith.constant 0 : index
    %c0_4 = arith.constant 0 : index
    %4 = vector.load %arg5[%c0_3, %c0_4] : memref<128x128xbf16, #tpu.memory_space<vmem>>, vector<128x128xbf16>
    tpu.vector_store %arg5[%c0_3, %c0_4], %3 {strides = array<i32>} : memref<128x128xbf16, #tpu.memory_space<vmem>>, vector<128x128xbf16>,
    %c0_5 = arith.constant 0 : index
    %c0_6 = arith.constant 0 : index
    %5 = vector.load %arg3[%c0_5, %c0_6] : memref<128x128xbf16, #tpu.memory_space<vmem>>, vector<128x128xbf16>
    %cst_7 = arith.constant dense<0.000000e+00> : vector<128x128xf32>
    %6 = tpu.matmul %0, %5, %cst_7 {dimension_numbers = #tpu.dot_dimension_numbers<[1], [0], [0], [1], [0, 0, 1, 1], [], []>} : vector<128x128xbf16>, vector<128x128xbf16>, vector<128x128xf32> -> vector<128x128xf32>
    %c0_8 = arith.constant 0 : index
    %c0_9 = arith.constant 0 : index
    %7 = vector.load %arg4[%c0_8, %c0_9] : memref<1x128xf32, #tpu.memory_space<vmem>>, vector<1x128xf32>
    %8 = vector.broadcast %7 : vector<1x128xf32> to vector<128x128xf32>
    %9 = arith.addf %6, %8 : vector<128x128xf32>
    %c0_10 = arith.constant 0 : index
    %c0_11 = arith.constant 0 : index
    %10 = vector.load %arg6[%c0_10, %c0_11] : memref<128x128xf32, #tpu.memory_space<vmem>>, vector<128x128xf32>
    tpu.vector_store %arg6[%c0_10, %c0_11], %9 {strides = array<i32>} : memref<128x128xf32, #tpu.memory_space<vmem>>, vector<128x128xf32>,
    return
  }
  func.func @transform_0(%arg0: i32) -> (i32, i32) {
    %c0_i32 = arith.constant 0 : i32
    %c0_i32_0 = arith.constant 0 : i32
    return %arg0, %c0_i32 : i32, i32
  }
  func.func @transform_1(%arg0: i32) -> (i32, i32) {
    %c0_i32 = arith.constant 0 : i32
    %c0_i32_0 = arith.constant 0 : i32
    %c0_i32_1 = arith.constant 0 : i32
    return %c0_i32, %c0_i32_0 : i32, i32
  }
  func.func @transform_2(%arg0: i32) -> (i32, i32) {
    %c0_i32 = arith.constant 0 : i32
    %c0_i32_0 = arith.constant 0 : i32
    %c0_i32_1 = arith.constant 0 : i32
    return %c0_i32, %c0_i32_0 : i32, i32
  }
  func.func @transform_3(%arg0: i32) -> (i32, i32) {
    %c0_i32 = arith.constant 0 : i32
    %c0_i32_0 = arith.constant 0 : i32
    %c0_i32_1 = arith.constant 0 : i32
    return %c0_i32, %c0_i32_0 : i32, i32
  }
  func.func @transform_4(%arg0: i32) -> (i32, i32) {
    %c0_i32 = arith.constant 0 : i32
    %c0_i32_0 = arith.constant 0 : i32
    return %arg0, %c0_i32 : i32, i32
  }
  func.func @transform_5(%arg0: i32) -> (i32, i32) {
    %c0_i32 = arith.constant 0 : i32
    %c0_i32_0 = arith.constant 0 : i32
    return %arg0, %c0_i32 : i32, i32
  }
}

</mosaic_0001>

<llo_original>
// kernel: tpu_custom_call.1
$region0: #{tpu_custom_call.1}
  #allocation0 [shape = 'u32[]', space=smem, size = 0x4, offset = 0x4, fixed_abs, tag = 'smem constant byte address 0x4 - core index']
  #allocation1 [shape = 'u32[72,128]{1,0:T(1,128)}', space=vmem, size = 0x9000, scoped, tag = 'internal scratch']
  %s0 = inlined_call_operand.hbm [shape: bf16[384,128], index: 0, kind: input, shape index: {}]
  %s1 = inlined_call_operand.hbm [shape: bf16[128,128], index: 1, kind: input, shape index: {}]
  %s2 = inlined_call_operand.hbm [shape: bf16[128,128], index: 2, kind: input, shape index: {}]
  %s3 = inlined_call_operand.vmem [shape: f32[1,128], index: 3, kind: input, shape index: {}]
  %s4 = inlined_call_operand.hbm [shape: bf16[384,128], index: 4, kind: output, shape index: {0}]
  %s5 = inlined_call_operand.hbm [shape: f32[384,128], index: 5, kind: output, shape index: {1}]
  %6 = xla_tuple %s4, %s5
  %s7 = sld [smem:[#allocation0]]
  $region69: #{tpu_custom_call.1} parent=0
    _
  %s9 = ssub.s32 1, %s7
  %s10 = scalar_select 0, %s9, %s7
  $region1: #{tpu_custom_call.1} parent=0
    #allocation2 [shape = 'u8[65536]{0}', space=vmem, size = 0x10000, scoped, tag = 'input window, operand 0']
    #allocation3 [shape = 's32[2]{0}', space=sflag, size = 0x8, scoped, tag = 'scoped memory for tpu_custom_call.1']
    #allocation4 [shape = 's32[2]{0}', space=sflag, size = 0x8, scoped, tag = 'scoped memory for tpu_custom_call.1']
    #allocation5 [shape = 'u8[32768]{0}', space=vmem, size = 0x8000, scoped, tag = 'input window, operand 1, single buffered']
    #allocation6 [shape = 's32[1]{0}', space=sflag, size = 0x4, scoped, tag = 'scoped memory for tpu_custom_call.1']
    #allocation7 [shape = 'u8[32768]{0}', space=vmem, size = 0x8000, scoped, tag = 'input window, operand 2, single buffered']
    #allocation8 [shape = 'u8[65536]{0}', space=vmem, size = 0x10000, scoped, tag = 'output window, operand 0']
    #allocation9 [shape = 'u8[131072]{0}', space=vmem, size = 0x20000, scoped, tag = 'output window, operand 1']
    #allocation10 [shape = 's32[2]{0}', space=sflag, size = 0x8, scoped, tag = 'scoped memory for tpu_custom_call.1']
    %11 = vsyncpa [#allocation3], 0
    %s12 = scalar_lea.sflag [#allocation3], 1
    %13 = vsyncpa %s12, 0
    %14 = vsyncpa [#allocation6], 0
    %15 = vsyncpa [#allocation4], 0
    %s16 = scalar_lea.sflag [#allocation4], 1
    %17 = vsyncpa %s16, 0
    %18 = vsyncpa [#allocation10], 0
    %s19 = scalar_lea.sflag [#allocation10], 1
    %20 = vsyncpa %s19, 0
    loop: start=0, step=1, limit=5
    $region2: #{tpu_custom_call.1} parent=1 // loop_pre_header
      _
    $region3: #{tpu_custom_call.1} parent=1 // loop_header
      %s22 = sphi 0, %s26
      %p23 = scmp.ge.s32.totalorder %s22, 5
      %s32 = sphi 0, %s34
      %s35 = sphi 0, %s32
      %s36 = sphi 0, %s35
      %s52 = sphi 0, %s36
      %s56 = sphi 0, %s56
      %s58 = sphi 0, %s56
      %s59 = sphi 0, %s58
      %s73 = sphi 0, %s59
      %s77 = sphi 0, %s77
      %s79 = sphi 0, %s77
      %s80 = sphi 0, %s79
      %s94 = sphi 0, %s80
      %s98 = sphi 0, %s98
      %s100 = sphi 0, %s98
      %s101 = sphi 0, %s100
      %s115 = sphi 0, %s101
      %s121 = sphi 0, %s123
      %s124 = sphi 0, %s121
      %s125 = sphi 0, %s124
      %s141 = sphi 0, %s125
      %s147 = sphi 0, %s149
      %s150 = sphi 0, %s147
      %s151 = sphi 0, %s150
      %s167 = sphi 0, %s151
    $region4: #{tpu_custom_call.1} parent=1 // loop_header_branch
      %25 = sbr.rel (%p23) target = $region8
    $region5: #{tpu_custom_call.1} parent=1 // loop_body
      %s27 = ssub.s32 %s22, 1
      %s28 = ssub.s32 %s22, 2
      %s29 = sadd.s32 %s22, 1
      %s30 = ssub.s32 %s22, %s29
      %p31 = scmp.eq.s32.totalorder %s30, 0
      %s33 = sadd.s32 %s32, 1
      %s34 = scalar_select %p31, %s32, %s33
      %p37 = pneg %p31
      %p38 = scmp.eq.s32.totalorder %s22, 2
      %p39 = por %p37, %p38
      %p40 = scmp.ne.s32.totalorder %s32, %s35
      %p41 = scmp.eq.s32.totalorder %s22, 0
      %p42 = por %p40, %p41
      %p43 = scmp.ne.s32.totalorder %s32, %s35
      %p44 = scmp.eq.s32.totalorder %s27, 2
      %p45 = por %p43, %p44
      %p46 = scmp.ne.s32.totalorder %s35, %s36
      %p47 = scmp.eq.s32.totalorder %s27, 0
      %p48 = por %p46, %p47
      %p49 = scmp.ne.s32.totalorder %s35, %s36
      %p50 = scmp.eq.s32.totalorder %s28, 2
      %p51 = por %p49, %p50
      %p53 = scmp.ne.s32.totalorder %s36, %s52
      %p54 = scmp.eq.s32.totalorder %s28, 0
      %p55 = por %p53, %p54
      %s57 = sadd.s32 %s56, 1
      %p60 = scmp.eq.s32.totalorder %s22, 2
      %p61 = scmp.ne.s32.totalorder %s56, %s58
      %p62 = scmp.eq.s32.totalorder %s22, 0
      %p63 = por %p61, %p62
      %p64 = scmp.ne.s32.totalorder %s56, %s58
      %p65 = scmp.eq.s32.totalorder %s27, 2
      %p66 = por %p64, %p65
      %p67 = scmp.ne.s32.totalorder %s58, %s59
      %p68 = scmp.eq.s32.totalorder %s27, 0
      %p69 = por %p67, %p68
      %p70 = scmp.ne.s32.totalorder %s58, %s59
      %p71 = scmp.eq.s32.totalorder %s28, 2
      %p72 = por %p70, %p71
      %p74 = scmp.ne.s32.totalorder %s59, %s73
      %p75 = scmp.eq.s32.totalorder %s28, 0
      %p76 = por %p74, %p75
      %s78 = sadd.s32 %s77, 1
      %p81 = scmp.eq.s32.totalorder %s22, 2
      %p82 = scmp.ne.s32.totalorder %s77, %s79
      %p83 = scmp.eq.s32.totalorder %s22, 0
      %p84 = por %p82, %p83
      %p85 = scmp.ne.s32.totalorder %s77, %s79
      %p86 = scmp.eq.s32.totalorder %s27, 2
      %p87 = por %p85, %p86
      %p88 = scmp.ne.s32.totalorder %s79, %s80
      %p89 = scmp.eq.s32.totalorder %s27, 0
      %p90 = por %p88, %p89
      %p91 = scmp.ne.s32.totalorder %s79, %s80
      %p92 = scmp.eq.s32.totalorder %s28, 2
      %p93 = por %p91, %p92
      %p95 = scmp.ne.s32.totalorder %s80, %s94
      %p96 = scmp.eq.s32.totalorder %s28, 0
      %p97 = por %p95, %p96
      %s99 = sadd.s32 %s98, 1
      %p102 = scmp.eq.s32.totalorder %s22, 2
      %p103 = scmp.ne.s32.totalorder %s98, %s100
      %p104 = scmp.eq.s32.totalorder %s22, 0
      %p105 = por %p103, %p104
      %p106 = scmp.ne.s32.totalorder %s98, %s100
      %p107 = scmp.eq.s32.totalorder %s27, 2
      %p108 = por %p106, %p107
      %p109 = scmp.ne.s32.totalorder %s100, %s101
      %p110 = scmp.eq.s32.totalorder %s27, 0
      %p111 = por %p109, %p110
      %p112 = scmp.ne.s32.totalorder %s100, %s101
      %p113 = scmp.eq.s32.totalorder %s28, 2
      %p114 = por %p112, %p113
      %p116 = scmp.ne.s32.totalorder %s101, %s115
      %p117 = scmp.eq.s32.totalorder %s28, 0
      %p118 = por %p116, %p117
      %s119 = ssub.s32 %s22, %s29
      %p120 = scmp.eq.s32.totalorder %s119, 0
      %s122 = sadd.s32 %s121, 1
      %s123 = scalar_select %p120, %s121, %s122
      %p126 = pneg %p120
      %p127 = scmp.eq.s32.totalorder %s22, 2
      %p128 = por %p126, %p127
      %p129 = scmp.ne.s32.totalorder %s121, %s124
      %p130 = scmp.eq.s32.totalorder %s22, 0
      %p131 = por %p129, %p130
      %p132 = scmp.ne.s32.totalorder %s121, %s124
      %p133 = scmp.eq.s32.totalorder %s27, 2
      %p134 = por %p132, %p133
      %p135 = scmp.ne.s32.totalorder %s124, %s125
      %p136 = scmp.eq.s32.totalorder %s27, 0
      %p137 = por %p135, %p136
      %p138 = scmp.ne.s32.totalorder %s124, %s125
      %p139 = scmp.eq.s32.totalorder %s28, 2
      %p140 = por %p138, %p139
      %p142 = scmp.ne.s32.totalorder %s125, %s141
      %p143 = scmp.eq.s32.totalorder %s28, 0
      %p144 = por %p142, %p143
      %s145 = ssub.s32 %s22, %s29
      %p146 = scmp.eq.s32.totalorder %s145, 0
      %s148 = sadd.s32 %s147, 1
      %s149 = scalar_select %p146, %s147, %s148
      %p152 = pneg %p146
      %p153 = scmp.eq.s32.totalorder %s22, 2
      %p154 = por %p152, %p153
      %p155 = scmp.ne.s32.totalorder %s147, %s150
      %p156 = scmp.eq.s32.totalorder %s22, 0
      %p157 = por %p155, %p156
      %p158 = scmp.ne.s32.totalorder %s147, %s150
      %p159 = scmp.eq.s32.totalorder %s27, 2
      %p160 = por %p158, %p159
      %p161 = scmp.ne.s32.totalorder %s150, %s151
      %p162 = scmp.eq.s32.totalorder %s27, 0
      %p163 = por %p161, %p162
      %p164 = scmp.ne.s32.totalorder %s150, %s151
      %p165 = scmp.eq.s32.totalorder %s28, 2
      %p166 = por %p164, %p165
      %p168 = scmp.ne.s32.totalorder %s151, %s167
      %p169 = scmp.eq.s32.totalorder %s28, 0
      %p170 = por %p168, %p169
      %p171 = scmp.le.s32.totalorder 1, %s22
      %p172 = scmp.lt.s32.totalorder %s22, 4
      %p173 = pnand %p171, %p172
      %p174 = pneg %p173
      // Predicated region
      $region9: #{tpu_custom_call.1} parent=5 // pred_check
        _
      $region10: #{tpu_custom_call.1} parent=5 // pred_check_branch
        %176 = sbr.rel (%p173) target = $region12
      $region11: #{tpu_custom_call.1} parent=5 // pred_region
        %s177 = ssub.s32 %s22, 1
        // Predicated region
        $region13: #{tpu_custom_call.1} parent=11 // pred_check
          %p178 = pneg %p69
        $region14: #{tpu_custom_call.1} parent=11 // pred_check_branch
          %180 = sbr.rel (%p178) target = $region16
        $region15: #{tpu_custom_call.1} parent=11 // pred_region
          %182 = vsyncadd [#allocation6], 0
          %s183 = sshll.u32 %s1, 4
          %s184 = int_to_ptr.hbm [resolvable:$true] %s183
          %s185 = sshll.u32 [#allocation5], 4
          %s186 = int_to_ptr.vmem [resolvable:$true] %s185
          %191 = dma.hbm_to_vmem [thread:$0]  %s184, 1024, %s186, [#allocation6], 64, 64, 4
        $region16: #{tpu_custom_call.1} parent=11 // pred_fallthru
          _
        // Predicated region
        $region17: #{tpu_custom_call.1} parent=11 // pred_check
          %p192 = pneg %p90
        $region18: #{tpu_custom_call.1} parent=11 // pred_check_branch
          %194 = sbr.rel (%p192) target = $region20
        $region19: #{tpu_custom_call.1} parent=11 // pred_region
          %196 = vsyncadd [#allocation6], 0
          %s197 = sshll.u32 %s2, 4
          %s198 = int_to_ptr.hbm [resolvable:$true] %s197
          %s199 = sshll.u32 [#allocation7], 4
          %s200 = int_to_ptr.vmem [resolvable:$true] %s199
          %205 = dma.hbm_to_vmem [thread:$0]  %s198, 1024, %s200, [#allocation6], 64, 64, 4
        $region20: #{tpu_custom_call.1} parent=11 // pred_fallthru
          _
        // Predicated region
        $region21: #{tpu_custom_call.1} parent=11 // pred_check
          %p206 = pneg %p111
        $region22: #{tpu_custom_call.1} parent=11 // pred_check_branch
          %208 = sbr.rel (%p206) target = $region24
        $region23: #{tpu_custom_call.1} parent=11 // pred_region
          _
        $region24: #{tpu_custom_call.1} parent=11 // pred_fallthru
          _
      $region12: #{tpu_custom_call.1} parent=5 // pred_fallthru
        _
      %p209 = scmp.lt.s32.totalorder %s22, 3
      // Predicated region
      $region25: #{tpu_custom_call.1} parent=5 // pred_check
        %p210 = pneg %p209
      $region26: #{tpu_custom_call.1} parent=5 // pred_check_branch
        %212 = sbr.rel (%p210) target = $region28
      $region27: #{tpu_custom_call.1} parent=5 // pred_region
        // Predicated region
        $region29: #{tpu_custom_call.1} parent=27 // pred_check
          %p213 = pneg %p42
        $region30: #{tpu_custom_call.1} parent=27 // pred_check_branch
          %215 = sbr.rel (%p213) target = $region32
        $region31: #{tpu_custom_call.1} parent=27 // pred_region
          %s216 = sand.u32 %s32, 1
          %s217 = scalar_lea.sflag [#allocation3], %s216
          %s218 = sand.u32 %s32, 1
          %s219 = smul.addr %s218, 64
          %s220 = scalar_lea.vmem [#allocation2], %s219
          %s221 = smul.u32 16, %s22
          %223 = vsyncadd %s217, 0
          %s224 = smul.addr %s221, 4
          %s225 = scalar_lea.hbm %s0, %s224
          %s226 = sshll.u32 %s225, 4
          %s227 = int_to_ptr.hbm [resolvable:$true] %s226
          %s228 = sshll.u32 %s220, 4
          %s229 = int_to_ptr.vmem [resolvable:$true] %s228
          %234 = dma.hbm_to_vmem [thread:$0]  %s227, 1024, %s229, %s217, 64, 64, 4
        $region32: #{tpu_custom_call.1} parent=27 // pred_fallthru
          _
      $region28: #{tpu_custom_call.1} parent=5 // pred_fallthru
        _
      %p235 = scmp.le.s32.totalorder 1, %s22
      %p236 = scmp.lt.s32.totalorder %s22, 4
      %p237 = pnand %p235, %p236
      %p238 = pneg %p237
      // Predicated region
      $region33: #{tpu_custom_call.1} parent=5 // pred_check
        _
      $region34: #{tpu_custom_call.1} parent=5 // pred_check_branch
        %240 = sbr.rel (%p237) target = $region36
      $region35: #{tpu_custom_call.1} parent=5 // pred_region
        %s241 = ssub.s32 %s22, 1
        %s242 = sand.u32 %s35, 1
        %s243 = scalar_lea.sflag [#allocation3], %s242
        %s244 = sand.u32 %s35, 1
        %s245 = smul.addr %s244, 64
        %s246 = scalar_lea.vmem [#allocation2], %s245
        // Predicated region
        $region37: #{tpu_custom_call.1} parent=35 // pred_check
          %p247 = pneg %p48
        $region38: #{tpu_custom_call.1} parent=35 // pred_check_branch
          %249 = sbr.rel (%p247) target = $region40
        $region39: #{tpu_custom_call.1} parent=35 // pred_region
          %251 = dma.done %s243, 1024
        $region40: #{tpu_custom_call.1} parent=35 // pred_fallthru
          _
        // Predicated region
        $region41: #{tpu_custom_call.1} parent=35 // pred_check
          %p252 = pneg %p69
        $region42: #{tpu_custom_call.1} parent=35 // pred_check_branch
          %254 = sbr.rel (%p252) target = $region44
        $region43: #{tpu_custom_call.1} parent=35 // pred_region
          %256 = dma.done [#allocation6], 1024
        $region44: #{tpu_custom_call.1} parent=35 // pred_fallthru
          _
        // Predicated region
        $region45: #{tpu_custom_call.1} parent=35 // pred_check
          %p257 = pneg %p90
        $region46: #{tpu_custom_call.1} parent=35 // pred_check_branch
          %259 = sbr.rel (%p257) target = $region48
        $region47: #{tpu_custom_call.1} parent=35 // pred_region
          %261 = dma.done [#allocation6], 1024
        $region48: #{tpu_custom_call.1} parent=35 // pred_fallthru
          _
        %s262 = sand.u32 %s35, 1
        %s263 = scalar_lea.sflag [#allocation3], %s262
        %s264 = sand.u32 %s35, 1
        %s265 = smul.addr %s264, 64
        %s266 = scalar_lea.vmem [#allocation2], %s265
        %p267 = pneg %p48
        %p268 = pneg %p45
        %p269 = pneg %p69
        %p270 = pneg %p66
        %p271 = pneg %p90
        %p272 = pneg %p87
        %p273 = pneg %p111
        %p274 = pneg %p108
        %p275 = pneg %p137
        %p276 = pneg %p134
        %s277 = sand.u32 %s124, 1
        %s278 = scalar_lea.sflag [#allocation4], %s277
        %s279 = sand.u32 %s124, 1
        %s280 = smul.addr %s279, 64
        %s281 = scalar_lea.vmem [#allocation8], %s280
        %p282 = pneg %p163
        %p283 = pneg %p160
        %s284 = sand.u32 %s150, 1
        %s285 = scalar_lea.sflag [#allocation10], %s284
        %s286 = sand.u32 %s150, 1
        %s287 = smul.addr %s286, 128
        %s288 = scalar_lea.vmem [#allocation9], %s287
        %s289 = smul.u32 16, %s27
        %s290 = smul.u32 16, %s27
        %s291 = smul.u32 16, %s27
        %v292 = vld [vmem:[%s246] sm:$0xf]
        %v293 = vld [vmem:[%s246 + $0x4] sm:$0xf]
        %v294 = vld [vmem:[%s246 + $0x8] sm:$0xf]
        %v295 = vld [vmem:[%s246 + $0xc] sm:$0xf]
        %v296 = vld [vmem:[%s246 + $0x10] sm:$0xf]
        %v297 = vld [vmem:[%s246 + $0x14] sm:$0xf]
        %v298 = vld [vmem:[%s246 + $0x18] sm:$0xf]
        %v299 = vld [vmem:[%s246 + $0x1c] sm:$0xf]
        %v300 = vld [vmem:[%s246 + $0x20] sm:$0xf]
        %v301 = vld [vmem:[%s246 + $0x24] sm:$0xf]
        %v302 = vld [vmem:[%s246 + $0x28] sm:$0xf]
        %v303 = vld [vmem:[%s246 + $0x2c] sm:$0xf]
        %v304 = vld [vmem:[%s246 + $0x30] sm:$0xf]
        %v305 = vld [vmem:[%s246 + $0x34] sm:$0xf]
        %v306 = vld [vmem:[%s246 + $0x38] sm:$0xf]
        %v307 = vld [vmem:[%s246 + $0x3c] sm:$0xf]
        %v308 = vld [vmem:[#allocation5] sm:$0xf]
        %v309 = vld [vmem:[#allocation5 + $0x4] sm:$0xf]
        %v310 = vld [vmem:[#allocation5 + $0x8] sm:$0xf]
        %v311 = vld [vmem:[#allocation5 + $0xc] sm:$0xf]
        %v312 = vld [vmem:[#allocation5 + $0x10] sm:$0xf]
        %v313 = vld [vmem:[#allocation5 + $0x14] sm:$0xf]
        %v314 = vld [vmem:[#allocation5 + $0x18] sm:$0xf]
        %v315 = vld [vmem:[#allocation5 + $0x1c] sm:$0xf]
        %v316 = vld [vmem:[#allocation5 + $0x20] sm:$0xf]
        %v317 = vld [vmem:[#allocation5 + $0x24] sm:$0xf]
        %v318 = vld [vmem:[#allocation5 + $0x28] sm:$0xf]
        %v319 = vld [vmem:[#allocation5 + $0x2c] sm:$0xf]
        %v320 = vld [vmem:[#allocation5 + $0x30] sm:$0xf]
        %v321 = vld [vmem:[#allocation5 + $0x34] sm:$0xf]
        %v322 = vld [vmem:[#allocation5 + $0x38] sm:$0xf]
        %v323 = vld [vmem:[#allocation5 + $0x3c] sm:$0xf]
        %v340 = vunpack.c.l.b16 %v292
        %v341 = vunpack.c.l.b16 %v293
        %v342 = vunpack.c.l.b16 %v294
        %v343 = vunpack.c.l.b16 %v295
        %v344 = vunpack.c.l.b16 %v296
        %v345 = vunpack.c.l.b16 %v297
        %v346 = vunpack.c.l.b16 %v298
        %v347 = vunpack.c.l.b16 %v299
        %v348 = vunpack.c.l.b16 %v300
        %v349 = vunpack.c.l.b16 %v301
        %v350 = vunpack.c.l.b16 %v302
        %v351 = vunpack.c.l.b16 %v303
        %v352 = vunpack.c.l.b16 %v304
        %v353 = vunpack.c.l.b16 %v305
        %v354 = vunpack.c.l.b16 %v306
        %v355 = vunpack.c.l.b16 %v307
        %v356 = vpack.c.b16 %v341, %v340
        %v357 = vpack.c.b16 %v343, %v342
        %v358 = vpack.c.b16 %v345, %v344
        %v359 = vpack.c.b16 %v347, %v346
        %v360 = vpack.c.b16 %v349, %v348
        %v361 = vpack.c.b16 %v351, %v350
        %v362 = vpack.c.b16 %v353, %v352
        %v363 = vpack.c.b16 %v355, %v354
        %v388 = vunpack.c.l.b16 %v308
        %v389 = vunpack.c.l.b16 %v309
        %v390 = vunpack.c.l.b16 %v310
        %v391 = vunpack.c.l.b16 %v311
        %v392 = vunpack.c.l.b16 %v312
        %v393 = vunpack.c.l.b16 %v313
        %v394 = vunpack.c.l.b16 %v314
        %v395 = vunpack.c.l.b16 %v315
        %v396 = vunpack.c.l.b16 %v316
        %v397 = vunpack.c.l.b16 %v317
        %v398 = vunpack.c.l.b16 %v318
        %v399 = vunpack.c.l.b16 %v319
        %v400 = vunpack.c.l.b16 %v320
        %v401 = vunpack.c.l.b16 %v321
        %v402 = vunpack.c.l.b16 %v322
        %v403 = vunpack.c.l.b16 %v323
        %v404 = vpack.c.b16 %v389, %v388
        %v405 = vpack.c.b16 %v391, %v390
        %v406 = vpack.c.b16 %v393, %v392
        %v407 = vpack.c.b16 %v395, %v394
        %v408 = vpack.c.b16 %v397, %v396
        %v409 = vpack.c.b16 %v399, %v398
        %v410 = vpack.c.b16 %v401, %v400
        %v411 = vpack.c.b16 %v403, %v402
        %420 = vmatpush.bf16.msra.mxu0 %v411
        %421 = vmatpush.bf16.msra.mxu0 %v410
        %422 = vmatpush.bf16.msra.mxu0 %v409
        %423 = vmatpush.bf16.msra.mxu0 %v408
        %424 = vmatpush.bf16.msra.mxu0 %v407
        %425 = vmatpush.bf16.msra.mxu0 %v406
        %426 = vmatpush.bf16.msra.mxu0 %v405
        %427 = vmatpush.bf16.msra.mxu0 %v404
        %428 = vmatmul.bf16.gmra.mxu0 %v356
        %v429 = vpop.f32.mrf.mxu0
        %v430 = vadd.f32 0.0, %v429
        %v431 = vpop.f32.mrf.mxu0
        %v432 = vadd.f32 0.0, %v431
        %433 = vmatmul.bf16.gmra.mxu0 %v357
        %v434 = vpop.f32.mrf.mxu0
        %v435 = vadd.f32 0.0, %v434
        %v436 = vpop.f32.mrf.mxu0
        %v437 = vadd.f32 0.0, %v436
        %438 = vmatmul.bf16.gmra.mxu0 %v358
        %v439 = vpop.f32.mrf.mxu0
        %v440 = vadd.f32 0.0, %v439
        %v441 = vpop.f32.mrf.mxu0
        %v442 = vadd.f32 0.0, %v441
        %443 = vmatmul.bf16.gmra.mxu0 %v359
        %v444 = vpop.f32.mrf.mxu0
        %v445 = vadd.f32 0.0, %v444
        %v446 = vpop.f32.mrf.mxu0
        %v447 = vadd.f32 0.0, %v446
        %448 = vmatmul.bf16.gmra.mxu0 %v360
        %v449 = vpop.f32.mrf.mxu0
        %v450 = vadd.f32 0.0, %v449
        %v451 = vpop.f32.mrf.mxu0
        %v452 = vadd.f32 0.0, %v451
        %453 = vmatmul.bf16.gmra.mxu0 %v361
        %v454 = vpop.f32.mrf.mxu0
        %v455 = vadd.f32 0.0, %v454
        %v456 = vpop.f32.mrf.mxu0
        %v457 = vadd.f32 0.0, %v456
        %458 = vmatmul.bf16.gmra.mxu0 %v362
        %v459 = vpop.f32.mrf.mxu0
        %v460 = vadd.f32 0.0, %v459
        %v461 = vpop.f32.mrf.mxu0
        %v462 = vadd.f32 0.0, %v461
        %463 = vmatmul.bf16.gmra.mxu0 %v363
        %v464 = vpop.f32.mrf.mxu0
        %v465 = vadd.f32 0.0, %v464
        %v466 = vpop.f32.mrf.mxu0
        %v467 = vadd.f32 0.0, %v466
        %468 = vdwg.mxu0
        %v469 = vpack.c.bf16 %v430, %v430
        %v470 = vpack.c.bf16 %v432, %v432
        %v471 = vpack.c.bf16 %v435, %v435
        %v472 = vpack.c.bf16 %v437, %v437
        %v473 = vpack.c.bf16 %v440, %v440
        %v474 = vpack.c.bf16 %v442, %v442
        %v475 = vpack.c.bf16 %v445, %v445
        %v476 = vpack.c.bf16 %v447, %v447
        %v477 = vpack.c.bf16 %v450, %v450
        %v478 = vpack.c.bf16 %v452, %v452
        %v479 = vpack.c.bf16 %v455, %v455
        %v480 = vpack.c.bf16 %v457, %v457
        %v481 = vpack.c.bf16 %v460, %v460
        %v482 = vpack.c.bf16 %v462, %v462
        %v483 = vpack.c.bf16 %v465, %v465
        %v484 = vpack.c.bf16 %v467, %v467
        %485 = vst [vmem:[%s281] sm:$0xf] %v469
        %486 = vst [vmem:[%s281 + $0x4] sm:$0xf] %v470
        %487 = vst [vmem:[%s281 + $0x8] sm:$0xf] %v471
        %488 = vst [vmem:[%s281 + $0xc] sm:$0xf] %v472
        %489 = vst [vmem:[%s281 + $0x10] sm:$0xf] %v473
        %490 = vst [vmem:[%s281 + $0x14] sm:$0xf] %v474
        %491 = vst [vmem:[%s281 + $0x18] sm:$0xf] %v475
        %492 = vst [vmem:[%s281 + $0x1c] sm:$0xf] %v476
        %493 = vst [vmem:[%s281 + $0x20] sm:$0xf] %v477
        %494 = vst [vmem:[%s281 + $0x24] sm:$0xf] %v478
        %495 = vst [vmem:[%s281 + $0x28] sm:$0xf] %v479
        %496 = vst [vmem:[%s281 + $0x2c] sm:$0xf] %v480
        %497 = vst [vmem:[%s281 + $0x30] sm:$0xf] %v481
        %498 = vst [vmem:[%s281 + $0x34] sm:$0xf] %v482
        %499 = vst [vmem:[%s281 + $0x38] sm:$0xf] %v483
        %500 = vst [vmem:[%s281 + $0x3c] sm:$0xf] %v484
        %v501 = vld [vmem:[#allocation7] sm:$0xf]
        %v502 = vld [vmem:[#allocation7 + $0x4] sm:$0xf]
        %v503 = vld [vmem:[#allocation7 + $0x8] sm:$0xf]
        %v504 = vld [vmem:[#allocation7 + $0xc] sm:$0xf]
        %v505 = vld [vmem:[#allocation7 + $0x10] sm:$0xf]
        %v506 = vld [vmem:[#allocation7 + $0x14] sm:$0xf]
        %v507 = vld [vmem:[#allocation7 + $0x18] sm:$0xf]
        %v508 = vld [vmem:[#allocation7 + $0x1c] sm:$0xf]
        %v509 = vld [vmem:[#allocation7 + $0x20] sm:$0xf]
        %v510 = vld [vmem:[#allocation7 + $0x24] sm:$0xf]
        %v511 = vld [vmem:[#allocation7 + $0x28] sm:$0xf]
        %v512 = vld [vmem:[#allocation7 + $0x2c] sm:$0xf]
        %v513 = vld [vmem:[#allocation7 + $0x30] sm:$0xf]
        %v514 = vld [vmem:[#allocation7 + $0x34] sm:$0xf]
        %v515 = vld [vmem:[#allocation7 + $0x38] sm:$0xf]
        %v516 = vld [vmem:[#allocation7 + $0x3c] sm:$0xf]
        %v517 = vld [vmem:[%s3] sm:$0x1]
        %v519 = vperm.slane %v517, 0
        %v537 = vunpack.c.l.b16 %v501
        %v538 = vunpack.c.l.b16 %v502
        %v539 = vunpack.c.l.b16 %v503
        %v540 = vunpack.c.l.b16 %v504
        %v541 = vunpack.c.l.b16 %v505
        %v542 = vunpack.c.l.b16 %v506
        %v543 = vunpack.c.l.b16 %v507
        %v544 = vunpack.c.l.b16 %v508
        %v545 = vunpack.c.l.b16 %v509
        %v546 = vunpack.c.l.b16 %v510
        %v547 = vunpack.c.l.b16 %v511
        %v548 = vunpack.c.l.b16 %v512
        %v549 = vunpack.c.l.b16 %v513
        %v550 = vunpack.c.l.b16 %v514
        %v551 = vunpack.c.l.b16 %v515
        %v552 = vunpack.c.l.b16 %v516
        %v553 = vpack.c.b16 %v538, %v537
        %v554 = vpack.c.b16 %v540, %v539
        %v555 = vpack.c.b16 %v542, %v541
        %v556 = vpack.c.b16 %v544, %v543
        %v557 = vpack.c.b16 %v546, %v545
        %v558 = vpack.c.b16 %v548, %v547
        %v559 = vpack.c.b16 %v550, %v549
        %v560 = vpack.c.b16 %v552, %v551
        %569 = vmatpush.bf16.msra.mxu0 %v560
        %570 = vmatpush.bf16.msra.mxu0 %v559
        %571 = vmatpush.bf16.msra.mxu0 %v558
        %572 = vmatpush.bf16.msra.mxu0 %v557
        %573 = vmatpush.bf16.msra.mxu0 %v556
        %574 = vmatpush.bf16.msra.mxu0 %v555
        %575 = vmatpush.bf16.msra.mxu0 %v554
        %576 = vmatpush.bf16.msra.mxu0 %v553
        %577 = vmatmul.bf16.gmra.mxu0 %v356
        %v578 = vpop.f32.mrf.mxu0
        %v579 = vadd.f32 %v519, %v578
        %v580 = vpop.f32.mrf.mxu0
        %v581 = vadd.f32 %v519, %v580
        %582 = vmatmul.bf16.gmra.mxu0 %v357
        %v583 = vpop.f32.mrf.mxu0
        %v584 = vadd.f32 %v519, %v583
        %v585 = vpop.f32.mrf.mxu0
        %v586 = vadd.f32 %v519, %v585
        %587 = vmatmul.bf16.gmra.mxu0 %v358
        %v588 = vpop.f32.mrf.mxu0
        %v589 = vadd.f32 %v519, %v588
        %v590 = vpop.f32.mrf.mxu0
        %v591 = vadd.f32 %v519, %v590
        %592 = vmatmul.bf16.gmra.mxu0 %v359
        %v593 = vpop.f32.mrf.mxu0
        %v594 = vadd.f32 %v519, %v593
        %v595 = vpop.f32.mrf.mxu0
        %v596 = vadd.f32 %v519, %v595
        %597 = vmatmul.bf16.gmra.mxu0 %v360
        %v598 = vpop.f32.mrf.mxu0
        %v599 = vadd.f32 %v519, %v598
        %v600 = vpop.f32.mrf.mxu0
        %v601 = vadd.f32 %v519, %v600
        %602 = vmatmul.bf16.gmra.mxu0 %v361
        %v603 = vpop.f32.mrf.mxu0
        %v604 = vadd.f32 %v519, %v603
        %v605 = vpop.f32.mrf.mxu0
        %v606 = vadd.f32 %v519, %v605
        %607 = vmatmul.bf16.gmra.mxu0 %v362
        %v608 = vpop.f32.mrf.mxu0
        %v609 = vadd.f32 %v519, %v608
        %v610 = vpop.f32.mrf.mxu0
        %v611 = vadd.f32 %v519, %v610
        %612 = vmatmul.bf16.gmra.mxu0 %v363
        %v613 = vpop.f32.mrf.mxu0
        %v614 = vadd.f32 %v519, %v613
        %v615 = vpop.f32.mrf.mxu0
        %v616 = vadd.f32 %v519, %v615
        %617 = vdwg.mxu0
        %618 = vst [vmem:[%s288] sm:$0xff] %v579
        %619 = vst [vmem:[%s288 + $0x8] sm:$0xff] %v581
        %620 = vst [vmem:[%s288 + $0x10] sm:$0xff] %v584
        %621 = vst [vmem:[%s288 + $0x18] sm:$0xff] %v586
        %622 = vst [vmem:[%s288 + $0x20] sm:$0xff] %v589
        %623 = vst [vmem:[%s288 + $0x28] sm:$0xff] %v591
        %624 = vst [vmem:[%s288 + $0x30] sm:$0xff] %v594
        %625 = vst [vmem:[%s288 + $0x38] sm:$0xff] %v596
        %626 = vst [vmem:[%s288 + $0x40] sm:$0xff] %v599
        %627 = vst [vmem:[%s288 + $0x48] sm:$0xff] %v601
        %628 = vst [vmem:[%s288 + $0x50] sm:$0xff] %v604
        %629 = vst [vmem:[%s288 + $0x58] sm:$0xff] %v606
        %630 = vst [vmem:[%s288 + $0x60] sm:$0xff] %v609
        %631 = vst [vmem:[%s288 + $0x68] sm:$0xff] %v611
        %632 = vst [vmem:[%s288 + $0x70] sm:$0xff] %v614
        %633 = vst [vmem:[%s288 + $0x78] sm:$0xff] %v616
        %s634 = sand.u32 %s124, 1
        %s635 = scalar_lea.sflag [#allocation4], %s634
        %s636 = sand.u32 %s124, 1
        %s637 = smul.addr %s636, 64
        %s638 = scalar_lea.vmem [#allocation8], %s637
        %s639 = sand.u32 %s150, 1
        %s640 = scalar_lea.sflag [#allocation10], %s639
        %s641 = sand.u32 %s150, 1
        %s642 = smul.addr %s641, 128
        %s643 = scalar_lea.vmem [#allocation9], %s642
        // Predicated region
        $region49: #{tpu_custom_call.1} parent=35 // pred_check
          %p644 = pneg %p134
        $region50: #{tpu_custom_call.1} parent=35 // pred_check_branch
          %646 = sbr.rel (%p644) target = $region52
        $region51: #{tpu_custom_call.1} parent=35 // pred_region
          %s647 = smul.u32 16, %s27
          %649 = vsyncadd %s635, 0
          %s650 = smul.addr %s647, 4
          %s651 = scalar_lea.hbm %s4, %s650
          %s652 = sshll.u32 %s638, 4
          %s653 = int_to_ptr.vmem [resolvable:$true] %s652
          %s654 = sshll.u32 %s651, 4
          %s655 = int_to_ptr.hbm [resolvable:$true] %s654
          %660 = dma.vmem_to_hbm [thread:$0]  %s653, 1024, %s655, %s635, 64, 64, 4
        $region52: #{tpu_custom_call.1} parent=35 // pred_fallthru
          _
        // Predicated region
        $region53: #{tpu_custom_call.1} parent=35 // pred_check
          %p661 = pneg %p160
        $region54: #{tpu_custom_call.1} parent=35 // pred_check_branch
          %663 = sbr.rel (%p661) target = $region56
        $region55: #{tpu_custom_call.1} parent=35 // pred_region
          %s664 = smul.u32 16, %s27
          %666 = vsyncadd %s640, 0
          %s667 = smul.addr %s664, 8
          %s668 = scalar_lea.hbm %s5, %s667
          %s669 = sshll.u32 %s643, 4
          %s670 = int_to_ptr.vmem [resolvable:$true] %s669
          %s671 = sshll.u32 %s668, 4
          %s672 = int_to_ptr.hbm [resolvable:$true] %s671
          %677 = dma.vmem_to_hbm [thread:$0]  %s670, 2048, %s672, %s640, 128, 128, 8
        $region56: #{tpu_custom_call.1} parent=35 // pred_fallthru
          _
      $region36: #{tpu_custom_call.1} parent=5 // pred_fallthru
        _
      %p678 = scmp.le.s32.totalorder 2, %s22
      // Predicated region
      $region57: #{tpu_custom_call.1} parent=5 // pred_check
        %p679 = pneg %p678
      $region58: #{tpu_custom_call.1} parent=5 // pred_check_branch
        %681 = sbr.rel (%p679) target = $region60
      $region59: #{tpu_custom_call.1} parent=5 // pred_region
        %s682 = ssub.s32 %s22, 2
        // Predicated region
        $region61: #{tpu_custom_call.1} parent=59 // pred_check
          %p683 = pneg %p140
        $region62: #{tpu_custom_call.1} parent=59 // pred_check_branch
          %685 = sbr.rel (%p683) target = $region64
        $region63: #{tpu_custom_call.1} parent=59 // pred_region
          %s686 = sand.u32 %s125, 1
          %s687 = scalar_lea.sflag [#allocation4], %s686
          %s688 = sand.u32 %s125, 1
          %s689 = smul.addr %s688, 64
          %s690 = scalar_lea.vmem [#allocation8], %s689
          %692 = dma.done %s687, 1024
        $region64: #{tpu_custom_call.1} parent=59 // pred_fallthru
          _
        // Predicated region
        $region65: #{tpu_custom_call.1} parent=59 // pred_check
          %p693 = pneg %p166
        $region66: #{tpu_custom_call.1} parent=59 // pred_check_branch
          %695 = sbr.rel (%p693) target = $region68
        $region67: #{tpu_custom_call.1} parent=59 // pred_region
          %s696 = sand.u32 %s151, 1
          %s697 = scalar_lea.sflag [#allocation10], %s696
          %s698 = sand.u32 %s151, 1
          %s699 = smul.addr %s698, 128
          %s700 = scalar_lea.vmem [#allocation9], %s699
          %702 = dma.done %s697, 2048
        $region68: #{tpu_custom_call.1} parent=59 // pred_fallthru
          _
      $region60: #{tpu_custom_call.1} parent=5 // pred_fallthru
        _
    $region6: #{tpu_custom_call.1} parent=1 // loop_footer
      %s26 = sadd.s32 1, %s22
    $region7: #{tpu_custom_call.1} parent=1 // loop_footer_branch
      %21 = sbr.rel target = $region3
    $region8: #{tpu_custom_call.1} parent=1 // loop_exit
      _
    %703 = vsyncpa [#allocation3], 1
    %s704 = scalar_lea.sflag [#allocation3], 1
    %705 = vsyncpa %s704, 1
    %706 = vsyncpa [#allocation6], 1
    %707 = vsyncpa [#allocation4], 1
    %s708 = scalar_lea.sflag [#allocation4], 1
    %709 = vsyncpa %s708, 1
    %710 = vsyncpa [#allocation10], 1
    %s711 = scalar_lea.sflag [#allocation10], 1
    %712 = vsyncpa %s711, 1

</llo_original>
